<compile_context>
chip_gen: v6e
topology: v6e:2x2x1
jax: 0.10.0
libtpu: 0.0.40
codegen_flags: <defaults>
</compile_context>

<pallas_src>
import jax
import jax.numpy as jnp
from jax.experimental import pallas as pl
from jax.experimental.pallas import tpu as pltpu

_LANE = 128
# Tile caps chosen to be safe on every generation: with bf16 operands the live
# set (2x input bufs + 2x output bufs + f32 acc) stays ~3 MiB, far under the
# VMEM budget of v5e/v6e (128 MiB) and v7x (64 MiB), while 256/512-wide tiles
# fill the 256x256 MXU on v6e/v7x and amortize the ~0.35 us grid-step cost.
_TM_MAX, _TN_MAX, _TK_MAX = 256, 512, 512


def _round_up(x, m):
    return (x + m - 1) // m * m


def _largest_dividing_tile(dim, cap, align):
    """Largest multiple of `align` <= cap that divides round_up(dim, align)."""
    padded = _round_up(dim, align)
    best, t, limit = align, align, min(cap, padded)
    while t <= limit:
        if padded % t == 0:
            best = t
        t += align
    return best, padded


def _pick_tm(m):
    # Multiple of 16 so bf16 operands keep their native (16,128) packing.
    return min(_TM_MAX, _round_up(m, 16))


def _pick_tn_tk(k, n, m_blocks=1):
    tk, _ = _largest_dividing_tile(k, _TK_MAX, _LANE)
    tn, np_ = _largest_dividing_tile(n, _TN_MAX, _LANE)
    # v7x has 2 TensorCores; megacore sharding needs a parallel grid axis with
    # >= 2 blocks.  If the batch axis collapses to one block, make sure the N
    # axis does not (when N allows it), while keeping tn a divisor of Np.
    if m_blocks <= 1 and np_ // tn < 2:
        t = tn - _LANE
        while t >= _LANE and np_ % t:
            t -= _LANE
        if t >= _LANE:
            tn = t
    return tn, tk


# ---------------------------------------------------------------------------
# Small fused path: one single-shot kernel, one dot (K = packed width), bias
# used as the accumulator init.  Output is lane-dense (OUT padded to 128).
# ---------------------------------------------------------------------------
def _fused_linear_kernel(x_ref, w_ref, b_ref, o_ref):
    acc = jnp.broadcast_to(b_ref[...], o_ref.shape)          # f32 bias init
    acc = acc + jnp.dot(x_ref[...], w_ref[...],
                        preferred_element_type=jnp.float32)
    o_ref[...] = acc.astype(o_ref.dtype)


def fused_linear(x, w_pad, b_pad2d):
    """y = x @ w_pad + b_pad2d, single-shot, everything resident in VMEM."""
    b_rows = x.shape[0]
    out_pad = w_pad.shape[1]
    vmem = pl.BlockSpec(memory_space=pltpu.MemorySpace.VMEM)
    return pl.pallas_call(
        _fused_linear_kernel,
        out_shape=jax.ShapeDtypeStruct((b_rows, out_pad), jnp.float32),
        in_specs=[vmem, vmem, vmem],
        out_specs=vmem,
    )(x, w_pad, b_pad2d)


# ---------------------------------------------------------------------------
# Tiled, BlockSpec-pipelined path.  grid = (M/tm, N/tn, K/tk), reduction axis
# last, f32 accumulator scratch initialized with the bias at k==0, store on
# the last k.  Operands may be bf16 (MXU-native on v5e/v6e/v7x); accumulation
# and the epilogue stay f32.
# ---------------------------------------------------------------------------
def _tiled_linear_kernel(x_ref, w_ref, b_ref, o_ref, acc_ref):
    k = pl.program_id(2)

    @pl.when(k == 0)
    def _():
        # Bias as the accumulator init: removes a full-tile VPU add + broadcast
        # from the epilogue (which sits between the last MXU pop and the vst).
        acc_ref[...] = jnp.broadcast_to(b_ref[...], acc_ref.shape)

    acc_ref[...] += jnp.dot(x_ref[...], w_ref[...],
                            preferred_element_type=jnp.float32)

    @pl.when(k == pl.num_programs(2) - 1)
    def _():
        o_ref[...] = acc_ref[...].astype(o_ref.dtype)


def tiled_linear_padded(xp, wp, b2d, *, tm, tn, tk):
    """y = xp @ wp + b2d on pre-padded inputs (dims are tile multiples)."""
    mp, kp = xp.shape
    kp2, np_ = wp.shape
    assert kp == kp2 and mp % tm == 0 and kp % tk == 0 and np_ % tn == 0
    return pl.pallas_call(
        _tiled_linear_kernel,
        out_shape=jax.ShapeDtypeStruct((mp, np_), jnp.float32),
        grid_spec=pltpu.PrefetchScalarGridSpec(
            num_scalar_prefetch=0,
            grid=(mp // tm, np_ // tn, kp // tk),
            in_specs=[
                pl.BlockSpec((tm, tk), lambda i, j, k: (i, k)),
                pl.BlockSpec((tk, tn), lambda i, j, k: (k, j)),
                pl.BlockSpec((1, tn), lambda i, j, k: (0, j)),
            ],
            out_specs=pl.BlockSpec((tm, tn), lambda i, j, k: (i, j)),
            scratch_shapes=[pltpu.VMEM((tm, tn), jnp.float32)],
        ),
        compiler_params=pltpu.CompilerParams(
            # Batch/output axes shard across v7x's 2 TCs; K stays serial.
            dimension_semantics=("parallel", "parallel", "arbitrary"),
            # 48 MiB: above v5e's 16 MiB scoped default, below v7x's 64 MiB
            # physical VMEM.  Actual live set with these tiles is ~3 MiB.
            vmem_limit_bytes=48 * 1024 * 1024,
        ),
    )(xp, wp, b2d)


def tiled_linear(x, w, b, *, use_bf16=True):
    """Convenience wrapper: pick tiles, pad, (bf16-)cast, run, slice back."""
    m, k = x.shape
    k2, n = w.shape
    assert k == k2
    tm = _pick_tm(m)
    tn, tk = _pick_tn_tk(k, n, m_blocks=-(-m // tm))
    mp, kp, np_ = _round_up(m, tm), _round_up(k, tk), _round_up(n, tn)
    dot_dt = jnp.bfloat16 if use_bf16 else jnp.float32
    xp = jnp.pad(x, ((0, mp - m), (0, kp - k))).astype(dot_dt)
    wp = jnp.pad(w, ((0, kp - k), (0, np_ - n))).astype(dot_dt)
    b2d = jnp.pad(jnp.asarray(b, jnp.float32).reshape(1, n),
                  ((0, 0), (0, np_ - n)))
    out = tiled_linear_padded(xp, wp, b2d, tm=tm, tn=tn, tk=tk)
    return out[:m, :n]


class EncConvNet:
    """JAX/Pallas re-implementation of the TenSEAL EncConvNet wrapper.

    fc10_weight is stored as (in_features, out_features) == linear10.weight.T,
    fc10_bias as (out_features,), exactly like the PyTorch module.  All static
    weight/bias preprocessing (lane-dense OUT padding, tile-multiple K/N
    padding, bf16 cast for the tiled path) is done ONCE here so repeated
    server calls never re-pad or re-cast the weight.
    """

    _FUSED_WEIGHT_BUDGET = 2 * 1024 * 1024   # padded f32 weight bytes
    _FUSED_CALL_BUDGET = 6 * 1024 * 1024     # per-call whole-VMEM footprint

    def __init__(self, fc10_weight, fc10_bias):
        w = jnp.asarray(fc10_weight, jnp.float32)
        b = jnp.asarray(fc10_bias, jnp.float32)
        in_f, out_f = w.shape
        self.in_features, self.out_features = int(in_f), int(out_f)

        # Path decided by weight size: the single-shot path has no pipeline, so
        # its whole-weight DMA is serial with the MXU work -> small weights only.
        w_pad_bytes = 4 * _round_up(self.in_features, 8) * \
            _round_up(self.out_features, _LANE)
        self.use_fused = w_pad_bytes <= self._FUSED_WEIGHT_BUDGET

        if self.use_fused:
            out_pad = _round_up(self.out_features, _LANE)
            self.out_pad = out_pad
            # f32 (exact) — this path is overhead-bound, not MXU-bound.
            self.w_prep = jnp.pad(w, ((0, 0), (0, out_pad - self.out_features)))
            self.b_prep = jnp.pad(b, (0, out_pad - self.out_features)
                                  ).reshape(1, out_pad)
        else:
            tn, tk = _pick_tn_tk(self.in_features, self.out_features,
                                 m_blocks=1)   # server batches are small
            kp = _round_up(self.in_features, tk)
            np_ = _round_up(self.out_features, tn)
            self.tn, self.tk, self.Kp, self.Np, self.out_pad = tn, tk, kp, np_, np_
            # bf16 weight: MXU-native on all generations and halves the
            # weight's HBM traffic; accumulation stays f32 in the kernel.
            self.w_prep = jnp.pad(
                w, ((0, kp - self.in_features), (0, np_ - self.out_features))
            ).astype(jnp.bfloat16)
            self.b_prep = jnp.pad(b, (0, np_ - self.out_features)).reshape(1, np_)

    def __call__(self, enc_x_chunks):
        # ts.CKKSVector.pack_vectors == concatenation along the feature axis.
        # The packed vector is tiny, so packing in the wrapper is cheaper than
        # feeding the MXU one K=8 dot per chunk inside the kernel.
        # TODO(synk): CKKS homomorphic evaluation itself has no Pallas
        # equivalent; the same arithmetic is performed on plaintext tensors.
        chunks = [jnp.asarray(c, jnp.float32) for c in enc_x_chunks]
        x = chunks[0] if len(chunks) == 1 else jnp.concatenate(chunks, axis=-1)
        b_rows, in_f = int(x.shape[0]), int(x.shape[1])
        assert in_f == self.in_features

        if self.use_fused:
            bp = _round_up(b_rows, 8)
            call_bytes = 4 * (bp * _round_up(in_f, _LANE)
                              + _round_up(in_f, 8) * self.out_pad
                              + bp * self.out_pad)
            if call_bytes <= self._FUSED_CALL_BUDGET:
                y = fused_linear(x, self.w_prep, self.b_prep)
            else:
                # Rare: tiny weight but huge batch -> pipelined tiled path.
                y = tiled_linear(x, self.w_prep, self.b_prep[0])
        else:
            tm = _pick_tm(b_rows)
            mp = _round_up(b_rows, tm)
            xp = jnp.pad(x, ((0, mp - b_rows), (0, self.Kp - in_f))
                         ).astype(jnp.bfloat16)
            y = tiled_linear_padded(xp, self.w_prep, self.b_prep,
                                    tm=tm, tn=self.tn, tk=self.tk)[:b_rows]
        return y[:, :self.out_features]


if __name__ == "__main__":
    key = jax.random.PRNGKey(0)
    keys = jax.random.split(key, 8)

    # --- 1. Small fused path (the module's actual regime) -------------------
    batch, n_chunks, chunk_dim, out_features = 8, 4, 8, 64
    in_features = n_chunks * chunk_dim                      # 32
    fc10_weight = jax.random.normal(
        keys[0], (in_features, out_features), jnp.float32) * 0.1
    fc10_bias = jax.random.normal(keys[1], (out_features,), jnp.float32) * 0.1
    xs = jax.random.normal(keys[2], (batch, in_features), jnp.float32)
    enc_x_chunks = [xs[:, i * chunk_dim:(i + 1) * chunk_dim]
                    for i in range(n_chunks)]

    net = EncConvNet(fc10_weight, fc10_bias)
    out = jax.block_until_ready(net(enc_x_chunks))
    ref = xs @ fc10_weight + fc10_bias
    assert out.shape == (batch, out_features)
    assert jnp.allclose(out, ref, atol=1e-4, rtol=1e-4), "fused path mismatch"

    # --- 2. Class tiled path (bigger weight: bf16 MXU, pre-padded at init) --
    batch2, in2, out2 = 8, 1024, 1024
    w2 = jax.random.normal(keys[3], (in2, out2), jnp.float32) * 0.05
    b2 = jax.random.normal(keys[4], (out2,), jnp.float32) * 0.1
    xs2 = jax.random.normal(keys[5], (batch2, in2), jnp.float32) * 0.1
    chunks2 = [xs2[:, i * 256:(i + 1) * 256] for i in range(4)]
    net2 = EncConvNet(w2, b2)
    out2_v = jax.block_until_ready(net2(chunks2))
    ref2 = xs2 @ w2 + b2
    assert out2_v.shape == (batch2, out2)
    assert jnp.allclose(out2_v, ref2, atol=2e-2, rtol=2e-2), \
        "class tiled path mismatch (bf16 MXU)"

    # --- 3. Standalone tiled_linear generalization check --------------------
    M, K, N = 256, 512, 256
    x_big = jax.random.normal(keys[6], (M, K), jnp.float32) * 0.1
    w_big = jax.random.normal(keys[7], (K, N), jnp.float32) * 0.1
    b_big = jnp.linspace(-0.1, 0.1, N, dtype=jnp.float32)
    out_big = jax.block_until_ready(tiled_linear(x_big, w_big, b_big))
    ref_big = x_big @ w_big + b_big
    assert out_big.shape == (M, N)
    assert jnp.allclose(out_big, ref_big, atol=2e-2, rtol=2e-2), \
        "tiled path mismatch (bf16 MXU)"

    print("KERNEL_OK")
</pallas_src>

<mosaic_0001>
module attributes {stable_mosaic.version = 11 : i64} {
  func.func @_fused_linear_kernel(%arg0: memref<8x32xf32, #tpu.memory_space<vmem>>, %arg1: memref<32x128xf32, #tpu.memory_space<vmem>>, %arg2: memref<1x128xf32, #tpu.memory_space<vmem>>, %arg3: memref<8x128xf32, #tpu.memory_space<vmem>>) attributes {dimension_semantics = [], scalar_prefetch = 0 : i64, scratch_operands = 0 : i64, tpu.core_type = #tpu.core_type<tc>} {
    %c0 = arith.constant 0 : index
    %c0_0 = arith.constant 0 : index
    %0 = vector.load %arg2[%c0, %c0_0] : memref<1x128xf32, #tpu.memory_space<vmem>>, vector<1x128xf32>
    %1 = vector.shape_cast %0 : vector<1x128xf32> to vector<1x128xf32>
    %2 = vector.broadcast %1 : vector<1x128xf32> to vector<8x128xf32>
    %c0_1 = arith.constant 0 : index
    %c0_2 = arith.constant 0 : index
    %3 = vector.load %arg0[%c0_1, %c0_2] : memref<8x32xf32, #tpu.memory_space<vmem>>, vector<8x32xf32>
    %c0_3 = arith.constant 0 : index
    %c0_4 = arith.constant 0 : index
    %4 = vector.load %arg1[%c0_3, %c0_4] : memref<32x128xf32, #tpu.memory_space<vmem>>, vector<32x128xf32>
    %cst = arith.constant dense<0.000000e+00> : vector<8x128xf32>
    %5 = tpu.matmul %3, %4, %cst {dimension_numbers = #tpu.dot_dimension_numbers<[1], [0], [0], [1], [0, 0, 1, 1], [], []>} : vector<8x32xf32>, vector<32x128xf32>, vector<8x128xf32> -> vector<8x128xf32>
    %6 = arith.addf %2, %5 : vector<8x128xf32>
    %c0_5 = arith.constant 0 : index
    %c0_6 = arith.constant 0 : index
    %7 = vector.load %arg3[%c0_5, %c0_6] : memref<8x128xf32, #tpu.memory_space<vmem>>, vector<8x128xf32>
    tpu.vector_store %arg3[%c0_5, %c0_6], %6 {strides = array<i32>} : memref<8x128xf32, #tpu.memory_space<vmem>>, vector<8x128xf32>,
    return
  }
}

</mosaic_0001>

<llo_original>
// kernel: tpu_custom_call.1
$region0: #{tpu_custom_call.1}
  #allocation0 [shape = 'u32[]', space=smem, size = 0x4, offset = 0x4, fixed_abs, tag = 'smem constant byte address 0x4 - core index']
  #allocation1 [shape = 'u32[144,128]{1,0:T(1,128)}', space=vmem, size = 0x12000, scoped, tag = 'internal scratch']
  %s0 = inlined_call_operand.hbm [shape: f32[8,32], index: 0, kind: input, shape index: {}]
  %s1 = inlined_call_operand.hbm [shape: f32[32,128], index: 1, kind: input, shape index: {}]
  %s2 = inlined_call_operand.vmem [shape: f32[1,128], index: 2, kind: input, shape index: {}]
  %s3 = inlined_call_operand.hbm [shape: f32[8,128], index: 3, kind: output, shape index: {}]
  %s4 = sld [smem:[#allocation0]]
  $region30: #{tpu_custom_call.1} parent=0
    _
  %s6 = ssub.s32 1, %s4
  %s7 = scalar_select 0, %s6, %s4
  $region1: #{tpu_custom_call.1} parent=0
    #allocation2 [shape = 'u8[4096]{0}', space=vmem, size = 0x1000, scoped, tag = 'input window, operand 0, single buffered']
    #allocation3 [shape = 's32[1]{0}', space=sflag, size = 0x4, scoped, tag = 'scoped memory for tpu_custom_call.1']
    #allocation4 [shape = 's32[1]{0}', space=sflag, size = 0x4, scoped, tag = 'scoped memory for tpu_custom_call.1']
    #allocation5 [shape = 'u8[16384]{0}', space=vmem, size = 0x4000, scoped, tag = 'input window, operand 1, single buffered']
    #allocation6 [shape = 's32[1]{0}', space=sflag, size = 0x4, scoped, tag = 'scoped memory for tpu_custom_call.1']
    #allocation7 [shape = 'u8[4096]{0}', space=vmem, size = 0x1000, scoped, tag = 'output window, operand 0, single buffered']
    %8 = vsyncpa [#allocation3], 0
    %9 = vsyncpa [#allocation6], 0
    %10 = vsyncpa [#allocation4], 0
    // Predicated region
    $region2: #{tpu_custom_call.1} parent=1 // pred_check
      _
    $region3: #{tpu_custom_call.1} parent=1 // pred_check_branch
      %12 = sbr.rel (0) target = $region5
    $region4: #{tpu_custom_call.1} parent=1 // pred_region
      %s14 = ssub.s32 128, 128
      %15 = vsyncadd [#allocation3], %s14
      %s17 = sshll.u32 [#allocation2], 4
      %s18 = int_to_ptr.vmem [resolvable:$true] %s17
      %20 = dma.hbm_to_vmem [thread:$0]  %s0, 128, %s18, [#allocation3]
    $region5: #{tpu_custom_call.1} parent=1 // pred_fallthru
      _
    // Predicated region
    $region6: #{tpu_custom_call.1} parent=1 // pred_check
      _
    $region7: #{tpu_custom_call.1} parent=1 // pred_check_branch
      %22 = sbr.rel (0) target = $region9
    $region8: #{tpu_custom_call.1} parent=1 // pred_region
      %s24 = ssub.s32 512, 512
      %25 = vsyncadd [#allocation6], %s24
      %s26 = sshll.u32 [#allocation5], 4
      %s27 = int_to_ptr.vmem [resolvable:$true] %s26
      %32 = dma.hbm_to_vmem [thread:$0]  %s1, 512, %s27, [#allocation6], 128, 128, 8
    $region9: #{tpu_custom_call.1} parent=1 // pred_fallthru
      _
    // Predicated region
    $region10: #{tpu_custom_call.1} parent=1 // pred_check
      _
    $region11: #{tpu_custom_call.1} parent=1 // pred_check_branch
      %34 = sbr.rel (0) target = $region13
    $region12: #{tpu_custom_call.1} parent=1 // pred_region
      _
    $region13: #{tpu_custom_call.1} parent=1 // pred_fallthru
      _
    // Predicated region
    $region14: #{tpu_custom_call.1} parent=1 // pred_check
      _
    $region15: #{tpu_custom_call.1} parent=1 // pred_check_branch
      %36 = sbr.rel (0) target = $region17
    $region16: #{tpu_custom_call.1} parent=1 // pred_region
      %37 = dma.done [#allocation3], 128
    $region17: #{tpu_custom_call.1} parent=1 // pred_fallthru
      _
    // Predicated region
    $region18: #{tpu_custom_call.1} parent=1 // pred_check
      _
    $region19: #{tpu_custom_call.1} parent=1 // pred_check_branch
      %39 = sbr.rel (0) target = $region21
    $region20: #{tpu_custom_call.1} parent=1 // pred_region
      %40 = dma.done [#allocation6], 512
    $region21: #{tpu_custom_call.1} parent=1 // pred_fallthru
      _
    %v41 = vld [vmem:[%s2] sm:$0x1]
    %v43 = vlaneseq
    %v44 = vshrl.u32 %v43, 7
    %v45 = vsub.s32 0, %v44
    %v46 = vrot.slane %v41, %v45
    %v48 = vld [vmem:[#allocation2] sm:$0xff]
    %v49 = vld [vmem:[#allocation5] sm:$0xff]
    %v50 = vld [vmem:[#allocation5 + $0x8] sm:$0xff]
    %v51 = vld [vmem:[#allocation5 + $0x10] sm:$0xff]
    %v52 = vld [vmem:[#allocation5 + $0x18] sm:$0xff]
    %vm53 = vcmask 261120
    %v55 = vsel %vm53, %v48, 0
    %57 = vmatprep.subr.mxu0 0.0
    %58 = vmatpush1.msra.mxu0 0.0
    %59 = vmatprep.subr.mxu0 0.0
    %60 = vmatpush1.msra.mxu0 0.0
    %61 = vmatprep.subr.mxu0 0.0
    %62 = vmatpush1.msra.mxu0 0.0
    %63 = vmatprep.subr.mxu0 0.0
    %64 = vmatpush1.msra.mxu0 0.0
    %65 = vmatprep.subr.mxu0 0.0
    %66 = vmatpush1.msra.mxu0 0.0
    %67 = vmatprep.subr.mxu0 0.0
    %68 = vmatpush1.msra.mxu0 0.0
    %69 = vmatprep.subr.mxu0 0.0
    %70 = vmatpush1.msra.mxu0 0.0
    %71 = vmatprep.subr.mxu0 0.0
    %72 = vmatpush1.msra.mxu0 0.0
    %73 = vmatprep.subr.mxu0 0.0
    %74 = vmatpush1.msra.mxu0 0.0
    %75 = vmatprep.subr.mxu0 0.0
    %76 = vmatpush1.msra.mxu0 0.0
    %77 = vmatprep.subr.mxu0 0.0
    %78 = vmatpush1.msra.mxu0 0.0
    %79 = vmatprep.subr.mxu0 0.0
    %80 = vmatpush1.msra.mxu0 0.0
    %81 = vmatprep.subr.mxu0 0.0
    %82 = vmatpush1.msra.mxu0 %v52
    %83 = vmatprep.subr.mxu0 0.0
    %84 = vmatpush1.msra.mxu0 %v51
    %85 = vmatprep.subr.mxu0 0.0
    %86 = vmatpush1.msra.mxu0 %v50
    %87 = vmatprep.subr.mxu0 0.0
    %88 = vmatpush1.msra.mxu0 %v49
    %89 = vmatprep.subr.mxu0 0.0
    %90 = vmatpush2.msra.mxu0 0.0
    %91 = vmatprep.subr.mxu0 0.0
    %92 = vmatpush2.msra.mxu0 0.0
    %93 = vmatprep.subr.mxu0 0.0
    %94 = vmatpush2.msra.mxu0 0.0
    %95 = vmatprep.subr.mxu0 0.0
    %96 = vmatpush2.msra.mxu0 0.0
    %97 = vmatprep.subr.mxu0 0.0
    %98 = vmatpush2.msra.mxu0 0.0
    %99 = vmatprep.subr.mxu0 0.0
    %100 = vmatpush2.msra.mxu0 0.0
    %101 = vmatprep.subr.mxu0 0.0
    %102 = vmatpush2.msra.mxu0 0.0
    %103 = vmatprep.subr.mxu0 0.0
    %104 = vmatpush2.msra.mxu0 0.0
    %105 = vmatprep.subr.mxu0 0.0
    %106 = vmatpush2.msra.mxu0 0.0
    %107 = vmatprep.subr.mxu0 0.0
    %108 = vmatpush2.msra.mxu0 0.0
    %109 = vmatprep.subr.mxu0 0.0
    %110 = vmatpush2.msra.mxu0 0.0
    %111 = vmatprep.subr.mxu0 0.0
    %112 = vmatpush2.msra.mxu0 0.0
    %113 = vmatprep.subr.mxu0 0.0
    %114 = vmatpush2.msra.mxu0 0.0
    %115 = vmatprep.subr.mxu0 0.0
    %116 = vmatpush2.msra.mxu0 0.0
    %117 = vmatprep.subr.mxu0 0.0
    %118 = vmatpush2.msra.mxu0 0.0
    %119 = vmatprep.subr.mxu0 0.0
    %120 = vmatpush2.msra.mxu0 0.0
    %121 = vmatprep.mubr.f32.mxu0 0.0
    %122 = vmatmul.mubr.f32.gmra.mxu0 %v55
    %v123 = vpop.f32.mrf.mxu0
    %v124 = vadd.f32 0.0, %v123
    %v125 = vpop.f32.mrf.mxu0
    %126 = vdwg.mxu0
    %v127 = vadd.f32 %v46, %v124
    %128 = vst [vmem:[#allocation7] sm:$0xff] %v127
    // Predicated region
    $region22: #{tpu_custom_call.1} parent=1 // pred_check
      _
    $region23: #{tpu_custom_call.1} parent=1 // pred_check_branch
      %130 = sbr.rel (0) target = $region25
    $region24: #{tpu_custom_call.1} parent=1 // pred_region
      %s132 = ssub.s32 128, 128
      %133 = vsyncadd [#allocation4], %s132
      %s135 = sshll.u32 [#allocation7], 4
      %s136 = int_to_ptr.vmem [resolvable:$true] %s135
      %138 = dma.vmem_to_hbm [thread:$0]  %s136, 128, %s3, [#allocation4]
    $region25: #{tpu_custom_call.1} parent=1 // pred_fallthru
      _
    // Predicated region
    $region26: #{tpu_custom_call.1} parent=1 // pred_check
      _
    $region27: #{tpu_custom_call.1} parent=1 // pred_check_branch
      %140 = sbr.rel (0) target = $region29
    $region28: #{tpu_custom_call.1} parent=1 // pred_region
      %141 = dma.done [#allocation4], 128
    $region29: #{tpu_custom_call.1} parent=1 // pred_fallthru
      _
    %142 = vsyncpa [#allocation3], 1
    %143 = vsyncpa [#allocation6], 1
    %144 = vsyncpa [#allocation4], 1

</llo_original>
